<compile_context>
chip_gen: v7x
topology: tpu7x:2x2x1
jax: 0.10.0
libtpu: 0.0.40
codegen_flags: <defaults>
</compile_context>

<pallas_src>
import functools

import jax
import jax.numpy as jnp
from jax.experimental import pallas as pl
from jax.experimental.pallas import tpu as pltpu


def _spconv_kernel(x_ref, m_ref, b_ref, o_ref):
    # x_ref: (B, C_in, H_in, W_in)        NCHW input, full block in VMEM.
    # m_ref: (kH, C_in, W_in, Ncol)       packed conv matrix; Ncol = C_out*W_out*r.
    #                                     m[kh, ci, win, c*W_r + w*r + j] =
    #                                       weight[j*C_out+c, ci, kh, win-w]  (0 outside the tap window)
    # b_ref: (1, 1, Ncol)                 bias pre-permuted into the same column order.
    # o_ref: (B, C_out, H_out, W_out*r)   final module output (sub-pixel rearrange fused).
    kH, C_in, W_in, Ncol = m_ref.shape
    B, C_out, H_out, W_r = o_ref.shape

    acc = jnp.zeros((B, H_out, Ncol), jnp.float32)
    # Static loops over kh (usually 1) and C_in; each step is ONE matmul with
    # M = B*H_out rows, K = W_in, N = Ncol lanes (lane-dense), f32 accumulate on MXU.
    for kh in range(kH):
        for ci in range(C_in):
            xs = x_ref[:, ci, kh:kh + H_out, :]       # (B, H_out, W_in) -- no lane shifts
            m = m_ref[kh, ci]                          # (W_in, Ncol)
            acc = acc + jnp.einsum(
                "bhw,wn->bhn", xs, m, preferred_element_type=jnp.float32)

    acc = acc + b_ref[...].astype(jnp.float32)         # (1,1,Ncol) broadcast over (B,H_out)

    # Columns are ordered (c, w*r + j): slice per output channel and store the final
    # (B, C_out, H_out, W_out*r) layout directly -- no post-kernel reshape/transpose.
    for c in range(C_out):
        o_ref[:, c, :, :] = acc[:, :, c * W_r:(c + 1) * W_r].astype(o_ref.dtype)


def _pack_params(weight_oihw, bias, W_in, r):
    """Fold the Conv2d weights + sub-pixel rearrange into a lane-dense conv matrix.

    conv_mat[kh, ci, win, c*W_r + w*r + j] = weight[j*C_out + c, ci, kh, win - w]
    (zero when win - w is outside [0, kW)).  Weight-only; precomputable once.
    """
    C_out_r, C_in, kH, kW = weight_oihw.shape
    C_out = C_out_r // r
    W_out = W_in - kW + 1
    W_r = W_out * r

    win = jnp.arange(W_in)
    w = jnp.arange(W_out)
    kw_idx = win[:, None] - w[None, :]                       # (W_in, W_out)
    valid = ((kw_idx >= 0) & (kw_idx < kW)).astype(weight_oihw.dtype)
    kw_idx = jnp.clip(kw_idx, 0, kW - 1)

    # w_t[kh, ci, j, c, kw] = weight[j*C_out + c, ci, kh, kw]
    w_t = weight_oihw.reshape(r, C_out, C_in, kH, kW).transpose(3, 2, 0, 1, 4)
    mat = w_t[:, :, :, :, kw_idx] * valid                    # (kH, C_in, r, C_out, W_in, W_out)
    mat = mat.transpose(0, 1, 4, 3, 5, 2)                    # (kH, C_in, W_in, C_out, W_out, r)
    conv_mat = mat.reshape(kH, C_in, W_in, C_out * W_r)

    # bias in the same (c, w*r + j) column order
    bias_vec = jnp.broadcast_to(
        bias.reshape(r, C_out).T[:, None, :], (C_out, W_out, r)
    ).reshape(1, 1, C_out * W_r)
    return conv_mat, bias_vec


def sp_conv_transpose2d(x, weight_oihw, bias, r):
    """x: (B, C_in, H_in, W_in) NCHW. Returns (B, C_out, H_out, W_out * r)."""
    B, C_in, H_in, W_in = x.shape
    C_out_r, C_in_w, kH, kW = weight_oihw.shape
    assert C_in_w == C_in and C_out_r % r == 0
    C_out = C_out_r // r
    H_out = H_in - kH + 1
    W_out = W_in - kW + 1
    W_r = W_out * r
    Ncol = C_out * W_r

    conv_mat, bias_vec = _pack_params(weight_oihw, bias, W_in, r)

    # Single grid step: the whole problem (~50 KB) fits trivially in VMEM on
    # v5e/v6e/v7x, so collapsing the batch grid removes per-step overhead and avoids
    # double-buffering the constant weight/bias operands.
    # TODO(synk): for large H/W, tile H_out with a ("parallel", ...) grid axis so both
    # v7x TensorCores get work and blocks stay within the 64 MiB v7x VMEM; the packed
    # conv matrix is O(W_in * W_out * r * C_out) per (kh, ci), so very wide inputs
    # would also want a W-tiled im2col contraction instead.
    return pl.pallas_call(
        _spconv_kernel,
        out_shape=jax.ShapeDtypeStruct((B, C_out, H_out, W_r), x.dtype),
        grid=(1,),
        in_specs=[
            pl.BlockSpec((B, C_in, H_in, W_in), lambda i: (0, 0, 0, 0)),
            pl.BlockSpec((kH, C_in, W_in, Ncol), lambda i: (0, 0, 0, 0)),
            pl.BlockSpec((1, 1, Ncol), lambda i: (0, 0, 0)),
        ],
        out_specs=pl.BlockSpec((B, C_out, H_out, W_r), lambda i: (0, 0, 0, 0)),
        compiler_params=pltpu.CompilerParams(dimension_semantics=("arbitrary",)),
    )(x, conv_mat, bias_vec)


def _reference(x, weight_oihw, bias, r):
    """Pure-JAX reference mirroring the PyTorch forward exactly."""
    conv = jax.lax.conv_general_dilated(
        x, weight_oihw, window_strides=(1, 1), padding="VALID",
        dimension_numbers=("NCHW", "OIHW", "NCHW"))
    conv = conv + bias.reshape(1, -1, 1, 1)
    B, nch, H, W = conv.shape
    out = conv.reshape(B, r, nch // r, H, W)
    out = jnp.transpose(out, (0, 2, 3, 4, 1))
    return out.reshape(B, nch // r, H, W * r)


if __name__ == "__main__":
    # Module config consistent with SPConvTranspose2d usage in DAT:
    in_channels, out_channels, kernel_size, r = 4, 4, (1, 3), 2
    B, H_in, W_in = 2, 16, 16
    kH, kW = kernel_size
    C_out_r = out_channels * r

    key = jax.random.PRNGKey(0)
    kx, kwt, kb = jax.random.split(key, 3)
    x = jax.random.normal(kx, (B, in_channels, H_in, W_in), dtype=jnp.float32)
    weight_oihw = 0.1 * jax.random.normal(
        kwt, (C_out_r, in_channels, kH, kW), dtype=jnp.float32)
    bias = 0.1 * jax.random.normal(kb, (C_out_r,), dtype=jnp.float32)

    fn = jax.jit(functools.partial(sp_conv_transpose2d, r=r))
    out = jax.block_until_ready(fn(x, weight_oihw, bias))

    ref = jax.block_until_ready(_reference(x, weight_oihw, bias, r))
    assert out.shape == (B, out_channels, H_in - kH + 1, (W_in - kW + 1) * r), out.shape
    assert jnp.allclose(out, ref, atol=1e-5, rtol=1e-5), float(jnp.max(jnp.abs(out - ref)))

    print("KERNEL_OK")
</pallas_src>

<mosaic_0001>
module attributes {stable_mosaic.version = 11 : i64} {
  func.func @_spconv_kernel(%arg0: i32, %arg1: memref<2x4x16x16xf32, #tpu.memory_space<vmem>>, %arg2: memref<1x4x16x112xf32, #tpu.memory_space<vmem>>, %arg3: memref<1x1x112xf32, #tpu.memory_space<vmem>>, %arg4: memref<2x4x16x28xf32, #tpu.memory_space<vmem>>) attributes {dimension_semantics = [#tpu.dimension_semantics<arbitrary>], iteration_bounds = array<i64: 1>, scalar_prefetch = 0 : i64, scratch_operands = 0 : i64, tpu.core_type = #tpu.core_type<tc>, window_params = [{pipeline_mode = #tpu.pipeline_mode<synchronous>, transform_indices = @transform_0, window_bounds = array<i64: 2, 4, 16, 16>}, {pipeline_mode = #tpu.pipeline_mode<synchronous>, transform_indices = @transform_1, window_bounds = array<i64: 1, 4, 16, 112>}, {pipeline_mode = #tpu.pipeline_mode<synchronous>, transform_indices = @transform_2, window_bounds = array<i64: 1, 1, 112>}, {pipeline_mode = #tpu.pipeline_mode<synchronous>, transform_indices = @transform_3, window_bounds = array<i64: 2, 4, 16, 28>}]} {
    %cst = arith.constant 0.000000e+00 : f32
    %0 = vector.broadcast %cst : f32 to vector<2x16x112xf32>
    %c0 = arith.constant 0 : index
    %c0_0 = arith.constant 0 : index
    %c0_1 = arith.constant 0 : index
    %c0_2 = arith.constant 0 : index
    %1 = vector.load %arg1[%c0, %c0_0, %c0_1, %c0_2] : memref<2x4x16x16xf32, #tpu.memory_space<vmem>>, vector<2x1x16x16xf32>
    %2 = vector.shape_cast %1 : vector<2x1x16x16xf32> to vector<2x16x16xf32>
    %c0_3 = arith.constant 0 : index
    %c0_4 = arith.constant 0 : index
    %c0_5 = arith.constant 0 : index
    %c0_6 = arith.constant 0 : index
    %3 = vector.load %arg2[%c0_3, %c0_4, %c0_5, %c0_6] : memref<1x4x16x112xf32, #tpu.memory_space<vmem>>, vector<1x1x16x112xf32>
    %4 = vector.shape_cast %3 : vector<1x1x16x112xf32> to vector<16x112xf32>
    "tpu.trace_start"() <{level = 10 : i32, message = "bhw,wn->bhn"}> : () -> ()
    %cst_7 = arith.constant dense<0.000000e+00> : vector<2x16x112xf32>
    %5 = tpu.matmul %2, %4, %cst_7 {dimension_numbers = #tpu.dot_dimension_numbers<[2], [0], [0, 1], [1], [0, 0, 0, 1, 1, 1], [], []>} : vector<2x16x16xf32>, vector<16x112xf32>, vector<2x16x112xf32> -> vector<2x16x112xf32>
    "tpu.trace_stop"() : () -> ()
    %6 = arith.addf %0, %5 : vector<2x16x112xf32>
    %c0_8 = arith.constant 0 : index
    %c1 = arith.constant 1 : index
    %c0_9 = arith.constant 0 : index
    %c0_10 = arith.constant 0 : index
    %7 = vector.load %arg1[%c0_8, %c1, %c0_9, %c0_10] : memref<2x4x16x16xf32, #tpu.memory_space<vmem>>, vector<2x1x16x16xf32>
    %8 = vector.shape_cast %7 : vector<2x1x16x16xf32> to vector<2x16x16xf32>
    %c0_11 = arith.constant 0 : index
    %c1_12 = arith.constant 1 : index
    %c0_13 = arith.constant 0 : index
    %c0_14 = arith.constant 0 : index
    %9 = vector.load %arg2[%c0_11, %c1_12, %c0_13, %c0_14] : memref<1x4x16x112xf32, #tpu.memory_space<vmem>>, vector<1x1x16x112xf32>
    %10 = vector.shape_cast %9 : vector<1x1x16x112xf32> to vector<16x112xf32>
    "tpu.trace_start"() <{level = 10 : i32, message = "bhw,wn->bhn"}> : () -> ()
    %cst_15 = arith.constant dense<0.000000e+00> : vector<2x16x112xf32>
    %11 = tpu.matmul %8, %10, %cst_15 {dimension_numbers = #tpu.dot_dimension_numbers<[2], [0], [0, 1], [1], [0, 0, 0, 1, 1, 1], [], []>} : vector<2x16x16xf32>, vector<16x112xf32>, vector<2x16x112xf32> -> vector<2x16x112xf32>
    "tpu.trace_stop"() : () -> ()
    %12 = arith.addf %6, %11 : vector<2x16x112xf32>
    %c0_16 = arith.constant 0 : index
    %c2 = arith.constant 2 : index
    %c0_17 = arith.constant 0 : index
    %c0_18 = arith.constant 0 : index
    %13 = vector.load %arg1[%c0_16, %c2, %c0_17, %c0_18] : memref<2x4x16x16xf32, #tpu.memory_space<vmem>>, vector<2x1x16x16xf32>
    %14 = vector.shape_cast %13 : vector<2x1x16x16xf32> to vector<2x16x16xf32>
    %c0_19 = arith.constant 0 : index
    %c2_20 = arith.constant 2 : index
    %c0_21 = arith.constant 0 : index
    %c0_22 = arith.constant 0 : index
    %15 = vector.load %arg2[%c0_19, %c2_20, %c0_21, %c0_22] : memref<1x4x16x112xf32, #tpu.memory_space<vmem>>, vector<1x1x16x112xf32>
    %16 = vector.shape_cast %15 : vector<1x1x16x112xf32> to vector<16x112xf32>
    "tpu.trace_start"() <{level = 10 : i32, message = "bhw,wn->bhn"}> : () -> ()
    %cst_23 = arith.constant dense<0.000000e+00> : vector<2x16x112xf32>
    %17 = tpu.matmul %14, %16, %cst_23 {dimension_numbers = #tpu.dot_dimension_numbers<[2], [0], [0, 1], [1], [0, 0, 0, 1, 1, 1], [], []>} : vector<2x16x16xf32>, vector<16x112xf32>, vector<2x16x112xf32> -> vector<2x16x112xf32>
    "tpu.trace_stop"() : () -> ()
    %18 = arith.addf %12, %17 : vector<2x16x112xf32>
    %c0_24 = arith.constant 0 : index
    %c3 = arith.constant 3 : index
    %c0_25 = arith.constant 0 : index
    %c0_26 = arith.constant 0 : index
    %19 = vector.load %arg1[%c0_24, %c3, %c0_25, %c0_26] : memref<2x4x16x16xf32, #tpu.memory_space<vmem>>, vector<2x1x16x16xf32>
    %20 = vector.shape_cast %19 : vector<2x1x16x16xf32> to vector<2x16x16xf32>
    %c0_27 = arith.constant 0 : index
    %c3_28 = arith.constant 3 : index
    %c0_29 = arith.constant 0 : index
    %c0_30 = arith.constant 0 : index
    %21 = vector.load %arg2[%c0_27, %c3_28, %c0_29, %c0_30] : memref<1x4x16x112xf32, #tpu.memory_space<vmem>>, vector<1x1x16x112xf32>
    %22 = vector.shape_cast %21 : vector<1x1x16x112xf32> to vector<16x112xf32>
    "tpu.trace_start"() <{level = 10 : i32, message = "bhw,wn->bhn"}> : () -> ()
    %cst_31 = arith.constant dense<0.000000e+00> : vector<2x16x112xf32>
    %23 = tpu.matmul %20, %22, %cst_31 {dimension_numbers = #tpu.dot_dimension_numbers<[2], [0], [0, 1], [1], [0, 0, 0, 1, 1, 1], [], []>} : vector<2x16x16xf32>, vector<16x112xf32>, vector<2x16x112xf32> -> vector<2x16x112xf32>
    "tpu.trace_stop"() : () -> ()
    %24 = arith.addf %18, %23 : vector<2x16x112xf32>
    %c0_32 = arith.constant 0 : index
    %c0_33 = arith.constant 0 : index
    %c0_34 = arith.constant 0 : index
    %25 = vector.load %arg3[%c0_32, %c0_33, %c0_34] : memref<1x1x112xf32, #tpu.memory_space<vmem>>, vector<1x1x112xf32>
    %26 = vector.broadcast %25 : vector<1x1x112xf32> to vector<2x16x112xf32>
    %27 = arith.addf %24, %26 : vector<2x16x112xf32>
    %28 = vector.extract_strided_slice %27 {offsets = [0, 0, 0], sizes = [2, 16, 28], strides = [1, 1, 1]} : vector<2x16x112xf32> to vector<2x16x28xf32>
    %c0_35 = arith.constant 0 : index
    %c0_36 = arith.constant 0 : index
    %c0_37 = arith.constant 0 : index
    %c0_38 = arith.constant 0 : index
    %29 = vector.load %arg4[%c0_35, %c0_36, %c0_37, %c0_38] : memref<2x4x16x28xf32, #tpu.memory_space<vmem>>, vector<2x1x16x28xf32>
    %30 = vector.shape_cast %29 : vector<2x1x16x28xf32> to vector<2x16x28xf32>
    %31 = vector.shape_cast %28 : vector<2x16x28xf32> to vector<2x1x16x28xf32>
    tpu.vector_store %arg4[%c0_35, %c0_36, %c0_37, %c0_38], %31 {strides = array<i32>} : memref<2x4x16x28xf32, #tpu.memory_space<vmem>>, vector<2x1x16x28xf32>,
    %32 = vector.extract_strided_slice %27 {offsets = [0, 0, 28], sizes = [2, 16, 28], strides = [1, 1, 1]} : vector<2x16x112xf32> to vector<2x16x28xf32>
    %c0_39 = arith.constant 0 : index
    %c1_40 = arith.constant 1 : index
    %c0_41 = arith.constant 0 : index
    %c0_42 = arith.constant 0 : index
    %33 = vector.load %arg4[%c0_39, %c1_40, %c0_41, %c0_42] : memref<2x4x16x28xf32, #tpu.memory_space<vmem>>, vector<2x1x16x28xf32>
    %34 = vector.shape_cast %33 : vector<2x1x16x28xf32> to vector<2x16x28xf32>
    %35 = vector.shape_cast %32 : vector<2x16x28xf32> to vector<2x1x16x28xf32>
    tpu.vector_store %arg4[%c0_39, %c1_40, %c0_41, %c0_42], %35 {strides = array<i32>} : memref<2x4x16x28xf32, #tpu.memory_space<vmem>>, vector<2x1x16x28xf32>,
    %36 = vector.extract_strided_slice %27 {offsets = [0, 0, 56], sizes = [2, 16, 28], strides = [1, 1, 1]} : vector<2x16x112xf32> to vector<2x16x28xf32>
    %c0_43 = arith.constant 0 : index
    %c2_44 = arith.constant 2 : index
    %c0_45 = arith.constant 0 : index
    %c0_46 = arith.constant 0 : index
    %37 = vector.load %arg4[%c0_43, %c2_44, %c0_45, %c0_46] : memref<2x4x16x28xf32, #tpu.memory_space<vmem>>, vector<2x1x16x28xf32>
    %38 = vector.shape_cast %37 : vector<2x1x16x28xf32> to vector<2x16x28xf32>
    %39 = vector.shape_cast %36 : vector<2x16x28xf32> to vector<2x1x16x28xf32>
    tpu.vector_store %arg4[%c0_43, %c2_44, %c0_45, %c0_46], %39 {strides = array<i32>} : memref<2x4x16x28xf32, #tpu.memory_space<vmem>>, vector<2x1x16x28xf32>,
    %40 = vector.extract_strided_slice %27 {offsets = [0, 0, 84], sizes = [2, 16, 28], strides = [1, 1, 1]} : vector<2x16x112xf32> to vector<2x16x28xf32>
    %c0_47 = arith.constant 0 : index
    %c3_48 = arith.constant 3 : index
    %c0_49 = arith.constant 0 : index
    %c0_50 = arith.constant 0 : index
    %41 = vector.load %arg4[%c0_47, %c3_48, %c0_49, %c0_50] : memref<2x4x16x28xf32, #tpu.memory_space<vmem>>, vector<2x1x16x28xf32>
    %42 = vector.shape_cast %41 : vector<2x1x16x28xf32> to vector<2x16x28xf32>
    %43 = vector.shape_cast %40 : vector<2x16x28xf32> to vector<2x1x16x28xf32>
    tpu.vector_store %arg4[%c0_47, %c3_48, %c0_49, %c0_50], %43 {strides = array<i32>} : memref<2x4x16x28xf32, #tpu.memory_space<vmem>>, vector<2x1x16x28xf32>,
    return
  }
  func.func @transform_0(%arg0: i32) -> (i32, i32, i32, i32) {
    %c0_i32 = arith.constant 0 : i32
    %c0_i32_0 = arith.constant 0 : i32
    %c0_i32_1 = arith.constant 0 : i32
    %c0_i32_2 = arith.constant 0 : i32
    %c0_i32_3 = arith.constant 0 : i32
    return %c0_i32, %c0_i32_0, %c0_i32_1, %c0_i32_2 : i32, i32, i32, i32
  }
  func.func @transform_1(%arg0: i32) -> (i32, i32, i32, i32) {
    %c0_i32 = arith.constant 0 : i32
    %c0_i32_0 = arith.constant 0 : i32
    %c0_i32_1 = arith.constant 0 : i32
    %c0_i32_2 = arith.constant 0 : i32
    %c0_i32_3 = arith.constant 0 : i32
    return %c0_i32, %c0_i32_0, %c0_i32_1, %c0_i32_2 : i32, i32, i32, i32
  }
  func.func @transform_2(%arg0: i32) -> (i32, i32, i32) {
    %c0_i32 = arith.constant 0 : i32
    %c0_i32_0 = arith.constant 0 : i32
    %c0_i32_1 = arith.constant 0 : i32
    %c0_i32_2 = arith.constant 0 : i32
    return %c0_i32, %c0_i32_0, %c0_i32_1 : i32, i32, i32
  }
  func.func @transform_3(%arg0: i32) -> (i32, i32, i32, i32) {
    %c0_i32 = arith.constant 0 : i32
    %c0_i32_0 = arith.constant 0 : i32
    %c0_i32_1 = arith.constant 0 : i32
    %c0_i32_2 = arith.constant 0 : i32
    %c0_i32_3 = arith.constant 0 : i32
    return %c0_i32, %c0_i32_0, %c0_i32_1, %c0_i32_2 : i32, i32, i32, i32
  }
}

</mosaic_0001>

<llo_original>
// kernel: sp_conv_transpose2d.1
$region0: #{sp_conv_transpose2d.1}
  #allocation0 [shape = 'u32[]', space=smem, size = 0x4, offset = 0x4, fixed_abs, tag = 'smem constant byte address 0x4 - core index']
  #allocation1 [shape = 'u32[144,128]{1,0:T(1,128)}', space=vmem, size = 0x12000, scoped, tag = 'internal scratch']
  %s0 = inlined_call_operand.vmem [shape: f32[2,4,16,16], index: 0, kind: input, shape index: {}]
  %s1 = inlined_call_operand.vmem [shape: f32[1,4,16,112], index: 1, kind: input, shape index: {}]
  %s2 = inlined_call_operand.vmem [shape: f32[1,1,112], index: 2, kind: input, shape index: {}]
  %s3 = inlined_call_operand.hbm [shape: f32[2,4,16,28], index: 3, kind: output, shape index: {}]
  %s4 = sld [smem:[#allocation0]]
  $region22: #{sp_conv_transpose2d.1} parent=0
    _
  %s6 = ssub.s32 1, %s4
  %s7 = scalar_select 0, %s6, %s4
  $region1: #{sp_conv_transpose2d.1} parent=0
    #allocation2 [shape = 'u8[65536]{0}', space=vmem, size = 0x10000, scoped, tag = 'output window, operand 0, single buffered']
    #allocation3 [shape = 's32[1]{0}', space=sflag, size = 0x4, scoped, tag = 'scoped memory for sp_conv_transpose2d.1']
    %8 = vsyncpa [#allocation3], 0
    // Predicated region
    $region2: #{sp_conv_transpose2d.1} parent=1 // pred_check
      _
    $region3: #{sp_conv_transpose2d.1} parent=1 // pred_check_branch
      %10 = sbr.rel (0) target = $region5
    $region4: #{sp_conv_transpose2d.1} parent=1 // pred_region
      _
    $region5: #{sp_conv_transpose2d.1} parent=1 // pred_fallthru
      _
    // Predicated region
    $region6: #{sp_conv_transpose2d.1} parent=1 // pred_check
      _
    $region7: #{sp_conv_transpose2d.1} parent=1 // pred_check_branch
      %12 = sbr.rel (0) target = $region9
    $region8: #{sp_conv_transpose2d.1} parent=1 // pred_region
      _
    $region9: #{sp_conv_transpose2d.1} parent=1 // pred_fallthru
      _
    // Predicated region
    $region10: #{sp_conv_transpose2d.1} parent=1 // pred_check
      _
    $region11: #{sp_conv_transpose2d.1} parent=1 // pred_check_branch
      %14 = sbr.rel (0) target = $region13
    $region12: #{sp_conv_transpose2d.1} parent=1 // pred_region
      _
    $region13: #{sp_conv_transpose2d.1} parent=1 // pred_fallthru
      _
    %v15 = vld [vmem:[%s0] sm:$0xff]
    %v16 = vld [vmem:[%s0 + $0x8] sm:$0xff]
    %v17 = vld [vmem:[%s0 + $0x40] sm:$0xff]
    %v18 = vld [vmem:[%s0 + $0x48] sm:$0xff]
    %v19 = vld [vmem:[%s1] sm:$0xff]
    %v20 = vld [vmem:[%s1 + $0x8] sm:$0xff]
    %s21 = scalar_lea.vmem %s0, 16
    %v22 = vld [vmem:[%s21] sm:$0xff]
    %v23 = vld [vmem:[%s21 + $0x8] sm:$0xff]
    %v24 = vld [vmem:[%s21 + $0x40] sm:$0xff]
    %v25 = vld [vmem:[%s21 + $0x48] sm:$0xff]
    %s26 = scalar_lea.vmem %s1, 16
    %v27 = vld [vmem:[%s26] sm:$0xff]
    %v28 = vld [vmem:[%s26 + $0x8] sm:$0xff]
    %vm29 = vcmask 130048
    %v31 = vsel %vm29, %v22, 0
    %v34 = vsel %vm29, %v23, 0
    %v37 = vsel %vm29, %v24, 0
    %v40 = vsel %vm29, %v25, 0
    %42 = vmatprep.subr.mxu0 0.0
    %43 = vmatpush1.msra.mxu0 %v27
    %44 = vmatprep.subr.mxu0 0.0
    %45 = vmatpush1.msra.mxu0 %v28
    %46 = vmatprep.subr.mxu0 0.0
    %47 = vmatpush1.msra.mxu0 0.0
    %48 = vmatprep.subr.mxu0 0.0
    %49 = vmatpush1.msra.mxu0 0.0
    %50 = vmatprep.subr.mxu0 0.0
    %51 = vmatpush1.msra.mxu0 0.0
    %52 = vmatprep.subr.mxu0 0.0
    %53 = vmatpush1.msra.mxu0 0.0
    %54 = vmatprep.subr.mxu0 0.0
    %55 = vmatpush1.msra.mxu0 0.0
    %56 = vmatprep.subr.mxu0 0.0
    %57 = vmatpush1.msra.mxu0 0.0
    %58 = vmatprep.subr.mxu0 0.0
    %59 = vmatpush1.msra.mxu0 0.0
    %60 = vmatprep.subr.mxu0 0.0
    %61 = vmatpush1.msra.mxu0 0.0
    %62 = vmatprep.subr.mxu0 0.0
    %63 = vmatpush1.msra.mxu0 0.0
    %64 = vmatprep.subr.mxu0 0.0
    %65 = vmatpush1.msra.mxu0 0.0
    %66 = vmatprep.subr.mxu0 0.0
    %67 = vmatpush1.msra.mxu0 0.0
    %68 = vmatprep.subr.mxu0 0.0
    %69 = vmatpush1.msra.mxu0 0.0
    %70 = vmatprep.subr.mxu0 0.0
    %71 = vmatpush1.msra.mxu0 0.0
    %72 = vmatprep.subr.mxu0 0.0
    %73 = vmatpush1.msra.mxu0 0.0
    %74 = vmatprep.subr.mxu0 0.0
    %75 = vmatpush1.msra.mxu0 0.0
    %76 = vmatprep.subr.mxu0 0.0
    %77 = vmatpush1.msra.mxu0 0.0
    %78 = vmatprep.subr.mxu0 0.0
    %79 = vmatpush1.msra.mxu0 0.0
    %80 = vmatprep.subr.mxu0 0.0
    %81 = vmatpush1.msra.mxu0 0.0
    %82 = vmatprep.subr.mxu0 0.0
    %83 = vmatpush1.msra.mxu0 0.0
    %84 = vmatprep.subr.mxu0 0.0
    %85 = vmatpush1.msra.mxu0 0.0
    %86 = vmatprep.subr.mxu0 0.0
    %87 = vmatpush1.msra.mxu0 0.0
    %88 = vmatprep.subr.mxu0 0.0
    %89 = vmatpush1.msra.mxu0 0.0
    %90 = vmatprep.subr.mxu0 0.0
    %91 = vmatpush1.msra.mxu0 0.0
    %92 = vmatprep.subr.mxu0 0.0
    %93 = vmatpush1.msra.mxu0 0.0
    %94 = vmatprep.subr.mxu0 0.0
    %95 = vmatpush1.msra.mxu0 0.0
    %96 = vmatprep.subr.mxu0 0.0
    %97 = vmatpush1.msra.mxu0 0.0
    %98 = vmatprep.subr.mxu0 0.0
    %99 = vmatpush1.msra.mxu0 0.0
    %100 = vmatprep.subr.mxu0 0.0
    %101 = vmatpush1.msra.mxu0 0.0
    %102 = vmatprep.subr.mxu0 0.0
    %103 = vmatpush1.msra.mxu0 0.0
    %104 = vmatprep.subr.mxu0 0.0
    %105 = vmatpush1.msra.mxu0 0.0
    %106 = vmatprep.mubr.f32.mxu0 0.0
    %107 = vmatmul.mubr.f32.gmra.mrb[0].mxu0 %v31
    %v108 = vpop.f32.mrb[0].mxu0
    %v109 = vadd.f32 0.0, %v108
    %v110 = vpop.f32.mrb[0].mxu0
    %111 = vmatprep.mubr.f32.mxu0 0.0
    %112 = vmatmul.mubr.f32.gmra.mrb[0].mxu0 %v34
    %v113 = vpop.f32.mrb[0].mxu0
    %v114 = vadd.f32 0.0, %v113
    %v115 = vpop.f32.mrb[0].mxu0
    %116 = vmatprep.mubr.f32.mxu0 0.0
    %117 = vmatmul.mubr.f32.gmra.mrb[0].mxu0 %v37
    %v118 = vpop.f32.mrb[0].mxu0
    %v119 = vadd.f32 0.0, %v118
    %v120 = vpop.f32.mrb[0].mxu0
    %121 = vmatprep.mubr.f32.mxu0 0.0
    %122 = vmatmul.mubr.f32.gmra.mrb[0].mxu0 %v40
    %v123 = vpop.f32.mrb[0].mxu0
    %v124 = vadd.f32 0.0, %v123
    %v125 = vpop.f32.mrb[0].mxu0
    %126 = vdwg.mxu0
    %v128 = vsel %vm29, %v15, 0
    %v131 = vsel %vm29, %v16, 0
    %v134 = vsel %vm29, %v17, 0
    %v137 = vsel %vm29, %v18, 0
    %139 = vmatprep.subr.mxu0 0.0
    %140 = vmatpush1.msra.mxu0 %v19
    %141 = vmatprep.subr.mxu0 0.0
    %142 = vmatpush1.msra.mxu0 %v20
    %143 = vmatprep.subr.mxu0 0.0
    %144 = vmatpush1.msra.mxu0 0.0
    %145 = vmatprep.subr.mxu0 0.0
    %146 = vmatpush1.msra.mxu0 0.0
    %147 = vmatprep.subr.mxu0 0.0
    %148 = vmatpush1.msra.mxu0 0.0
    %149 = vmatprep.subr.mxu0 0.0
    %150 = vmatpush1.msra.mxu0 0.0
    %151 = vmatprep.subr.mxu0 0.0
    %152 = vmatpush1.msra.mxu0 0.0
    %153 = vmatprep.subr.mxu0 0.0
    %154 = vmatpush1.msra.mxu0 0.0
    %155 = vmatprep.subr.mxu0 0.0
    %156 = vmatpush1.msra.mxu0 0.0
    %157 = vmatprep.subr.mxu0 0.0
    %158 = vmatpush1.msra.mxu0 0.0
    %159 = vmatprep.subr.mxu0 0.0
    %160 = vmatpush1.msra.mxu0 0.0
    %161 = vmatprep.subr.mxu0 0.0
    %162 = vmatpush1.msra.mxu0 0.0
    %163 = vmatprep.subr.mxu0 0.0
    %164 = vmatpush1.msra.mxu0 0.0
    %165 = vmatprep.subr.mxu0 0.0
    %166 = vmatpush1.msra.mxu0 0.0
    %167 = vmatprep.subr.mxu0 0.0
    %168 = vmatpush1.msra.mxu0 0.0
    %169 = vmatprep.subr.mxu0 0.0
    %170 = vmatpush1.msra.mxu0 0.0
    %171 = vmatprep.subr.mxu0 0.0
    %172 = vmatpush1.msra.mxu0 0.0
    %173 = vmatprep.subr.mxu0 0.0
    %174 = vmatpush1.msra.mxu0 0.0
    %175 = vmatprep.subr.mxu0 0.0
    %176 = vmatpush1.msra.mxu0 0.0
    %177 = vmatprep.subr.mxu0 0.0
    %178 = vmatpush1.msra.mxu0 0.0
    %179 = vmatprep.subr.mxu0 0.0
    %180 = vmatpush1.msra.mxu0 0.0
    %181 = vmatprep.subr.mxu0 0.0
    %182 = vmatpush1.msra.mxu0 0.0
    %183 = vmatprep.subr.mxu0 0.0
    %184 = vmatpush1.msra.mxu0 0.0
    %185 = vmatprep.subr.mxu0 0.0
    %186 = vmatpush1.msra.mxu0 0.0
    %187 = vmatprep.subr.mxu0 0.0
    %188 = vmatpush1.msra.mxu0 0.0
    %189 = vmatprep.subr.mxu0 0.0
    %190 = vmatpush1.msra.mxu0 0.0
    %191 = vmatprep.subr.mxu0 0.0
    %192 = vmatpush1.msra.mxu0 0.0
    %193 = vmatprep.subr.mxu0 0.0
    %194 = vmatpush1.msra.mxu0 0.0
    %195 = vmatprep.subr.mxu0 0.0
    %196 = vmatpush1.msra.mxu0 0.0
    %197 = vmatprep.subr.mxu0 0.0
    %198 = vmatpush1.msra.mxu0 0.0
    %199 = vmatprep.subr.mxu0 0.0
    %200 = vmatpush1.msra.mxu0 0.0
    %201 = vmatprep.subr.mxu0 0.0
    %202 = vmatpush1.msra.mxu0 0.0
    %203 = vmatprep.mubr.f32.mxu0 0.0
    %204 = vmatmul.mubr.f32.gmra.mrb[0].mxu0 %v128
    %v205 = vpop.f32.mrb[0].mxu0
    %v206 = vadd.f32 %v109, %v205
    %v207 = vpop.f32.mrb[0].mxu0
    %208 = vmatprep.mubr.f32.mxu0 0.0
    %209 = vmatmul.mubr.f32.gmra.mrb[0].mxu0 %v131
    %v210 = vpop.f32.mrb[0].mxu0
    %v211 = vadd.f32 %v114, %v210
    %v212 = vpop.f32.mrb[0].mxu0
    %213 = vmatprep.mubr.f32.mxu0 0.0
    %214 = vmatmul.mubr.f32.gmra.mrb[0].mxu0 %v134
    %v215 = vpop.f32.mrb[0].mxu0
    %v216 = vadd.f32 %v119, %v215
    %v217 = vpop.f32.mrb[0].mxu0
    %218 = vmatprep.mubr.f32.mxu0 0.0
    %219 = vmatmul.mubr.f32.gmra.mrb[0].mxu0 %v137
    %v220 = vpop.f32.mrb[0].mxu0
    %v221 = vadd.f32 %v124, %v220
    %v222 = vpop.f32.mrb[0].mxu0
    %223 = vdwg.mxu0
    %s224 = scalar_lea.vmem %s0, 32
    %v225 = vld [vmem:[%s224] sm:$0xff]
    %v226 = vld [vmem:[%s224 + $0x8] sm:$0xff]
    %v227 = vld [vmem:[%s224 + $0x40] sm:$0xff]
    %v228 = vld [vmem:[%s224 + $0x48] sm:$0xff]
    %s229 = scalar_lea.vmem %s1, 32
    %v230 = vld [vmem:[%s229] sm:$0xff]
    %v231 = vld [vmem:[%s229 + $0x8] sm:$0xff]
    %v233 = vsel %vm29, %v225, 0
    %v236 = vsel %vm29, %v226, 0
    %v239 = vsel %vm29, %v227, 0
    %v242 = vsel %vm29, %v228, 0
    %244 = vmatprep.subr.mxu0 0.0
    %245 = vmatpush1.msra.mxu0 %v230
    %246 = vmatprep.subr.mxu0 0.0
    %247 = vmatpush1.msra.mxu0 %v231
    %248 = vmatprep.subr.mxu0 0.0
    %249 = vmatpush1.msra.mxu0 0.0
    %250 = vmatprep.subr.mxu0 0.0
    %251 = vmatpush1.msra.mxu0 0.0
    %252 = vmatprep.subr.mxu0 0.0
    %253 = vmatpush1.msra.mxu0 0.0
    %254 = vmatprep.subr.mxu0 0.0
    %255 = vmatpush1.msra.mxu0 0.0
    %256 = vmatprep.subr.mxu0 0.0
    %257 = vmatpush1.msra.mxu0 0.0
    %258 = vmatprep.subr.mxu0 0.0
    %259 = vmatpush1.msra.mxu0 0.0
    %260 = vmatprep.subr.mxu0 0.0
    %261 = vmatpush1.msra.mxu0 0.0
    %262 = vmatprep.subr.mxu0 0.0
    %263 = vmatpush1.msra.mxu0 0.0
    %264 = vmatprep.subr.mxu0 0.0
    %265 = vmatpush1.msra.mxu0 0.0
    %266 = vmatprep.subr.mxu0 0.0
    %267 = vmatpush1.msra.mxu0 0.0
    %268 = vmatprep.subr.mxu0 0.0
    %269 = vmatpush1.msra.mxu0 0.0
    %270 = vmatprep.subr.mxu0 0.0
    %271 = vmatpush1.msra.mxu0 0.0
    %272 = vmatprep.subr.mxu0 0.0
    %273 = vmatpush1.msra.mxu0 0.0
    %274 = vmatprep.subr.mxu0 0.0
    %275 = vmatpush1.msra.mxu0 0.0
    %276 = vmatprep.subr.mxu0 0.0
    %277 = vmatpush1.msra.mxu0 0.0
    %278 = vmatprep.subr.mxu0 0.0
    %279 = vmatpush1.msra.mxu0 0.0
    %280 = vmatprep.subr.mxu0 0.0
    %281 = vmatpush1.msra.mxu0 0.0
    %282 = vmatprep.subr.mxu0 0.0
    %283 = vmatpush1.msra.mxu0 0.0
    %284 = vmatprep.subr.mxu0 0.0
    %285 = vmatpush1.msra.mxu0 0.0
    %286 = vmatprep.subr.mxu0 0.0
    %287 = vmatpush1.msra.mxu0 0.0
    %288 = vmatprep.subr.mxu0 0.0
    %289 = vmatpush1.msra.mxu0 0.0
    %290 = vmatprep.subr.mxu0 0.0
    %291 = vmatpush1.msra.mxu0 0.0
    %292 = vmatprep.subr.mxu0 0.0
    %293 = vmatpush1.msra.mxu0 0.0
    %294 = vmatprep.subr.mxu0 0.0
    %295 = vmatpush1.msra.mxu0 0.0
    %296 = vmatprep.subr.mxu0 0.0
    %297 = vmatpush1.msra.mxu0 0.0
    %298 = vmatprep.subr.mxu0 0.0
    %299 = vmatpush1.msra.mxu0 0.0
    %300 = vmatprep.subr.mxu0 0.0
    %301 = vmatpush1.msra.mxu0 0.0
    %302 = vmatprep.subr.mxu0 0.0
    %303 = vmatpush1.msra.mxu0 0.0
    %304 = vmatprep.subr.mxu0 0.0
    %305 = vmatpush1.msra.mxu0 0.0
    %306 = vmatprep.subr.mxu0 0.0
    %307 = vmatpush1.msra.mxu0 0.0
    %308 = vmatprep.mubr.f32.mxu0 0.0
    %309 = vmatmul.mubr.f32.gmra.mrb[0].mxu0 %v233
    %v310 = vpop.f32.mrb[0].mxu0
    %v311 = vadd.f32 0.0, %v310
    %v312 = vpop.f32.mrb[0].mxu0
    %313 = vmatprep.mubr.f32.mxu0 0.0
    %314 = vmatmul.mubr.f32.gmra.mrb[0].mxu0 %v236
    %v315 = vpop.f32.mrb[0].mxu0
    %v316 = vadd.f32 0.0, %v315
    %v317 = vpop.f32.mrb[0].mxu0
    %318 = vmatprep.mubr.f32.mxu0 0.0
    %319 = vmatmul.mubr.f32.gmra.mrb[0].mxu0 %v239
    %v320 = vpop.f32.mrb[0].mxu0
    %v321 = vadd.f32 0.0, %v320
    %v322 = vpop.f32.mrb[0].mxu0
    %323 = vmatprep.mubr.f32.mxu0 0.0
    %324 = vmatmul.mubr.f32.gmra.mrb[0].mxu0 %v242
    %v325 = vpop.f32.mrb[0].mxu0
    %v326 = vadd.f32 0.0, %v325
    %v327 = vpop.f32.mrb[0].mxu0
    %328 = vdwg.mxu0
    %v329 = vadd.f32 %v206, %v311
    %v330 = vadd.f32 %v211, %v316
    %v331 = vadd.f32 %v216, %v321
    %v332 = vadd.f32 %v221, %v326
    %s333 = scalar_lea.vmem %s0, 48
    %v334 = vld [vmem:[%s333] sm:$0xff]
    %v335 = vld [vmem:[%s333 + $0x8] sm:$0xff]
    %v336 = vld [vmem:[%s333 + $0x40] sm:$0xff]
    %v337 = vld [vmem:[%s333 + $0x48] sm:$0xff]
    %s338 = scalar_lea.vmem %s1, 48
    %v339 = vld [vmem:[%s338] sm:$0xff]
    %v340 = vld [vmem:[%s338 + $0x8] sm:$0xff]
    %v342 = vsel %vm29, %v334, 0
    %v345 = vsel %vm29, %v335, 0
    %v348 = vsel %vm29, %v336, 0
    %v351 = vsel %vm29, %v337, 0
    %353 = vmatprep.subr.mxu0 0.0
    %354 = vmatpush1.msra.mxu0 %v339
    %355 = vmatprep.subr.mxu0 0.0
    %356 = vmatpush1.msra.mxu0 %v340
    %357 = vmatprep.subr.mxu0 0.0
    %358 = vmatpush1.msra.mxu0 0.0
    %359 = vmatprep.subr.mxu0 0.0
    %360 = vmatpush1.msra.mxu0 0.0
    %361 = vmatprep.subr.mxu0 0.0
    %362 = vmatpush1.msra.mxu0 0.0
    %363 = vmatprep.subr.mxu0 0.0
    %364 = vmatpush1.msra.mxu0 0.0
    %365 = vmatprep.subr.mxu0 0.0
    %366 = vmatpush1.msra.mxu0 0.0
    %367 = vmatprep.subr.mxu0 0.0
    %368 = vmatpush1.msra.mxu0 0.0
    %369 = vmatprep.subr.mxu0 0.0
    %370 = vmatpush1.msra.mxu0 0.0
    %371 = vmatprep.subr.mxu0 0.0
    %372 = vmatpush1.msra.mxu0 0.0
    %373 = vmatprep.subr.mxu0 0.0
    %374 = vmatpush1.msra.mxu0 0.0
    %375 = vmatprep.subr.mxu0 0.0
    %376 = vmatpush1.msra.mxu0 0.0
    %377 = vmatprep.subr.mxu0 0.0
    %378 = vmatpush1.msra.mxu0 0.0
    %379 = vmatprep.subr.mxu0 0.0
    %380 = vmatpush1.msra.mxu0 0.0
    %381 = vmatprep.subr.mxu0 0.0
    %382 = vmatpush1.msra.mxu0 0.0
    %383 = vmatprep.subr.mxu0 0.0
    %384 = vmatpush1.msra.mxu0 0.0
    %385 = vmatprep.subr.mxu0 0.0
    %386 = vmatpush1.msra.mxu0 0.0
    %387 = vmatprep.subr.mxu0 0.0
    %388 = vmatpush1.msra.mxu0 0.0
    %389 = vmatprep.subr.mxu0 0.0
    %390 = vmatpush1.msra.mxu0 0.0
    %391 = vmatprep.subr.mxu0 0.0
    %392 = vmatpush1.msra.mxu0 0.0
    %393 = vmatprep.subr.mxu0 0.0
    %394 = vmatpush1.msra.mxu0 0.0
    %395 = vmatprep.subr.mxu0 0.0
    %396 = vmatpush1.msra.mxu0 0.0
    %397 = vmatprep.subr.mxu0 0.0
    %398 = vmatpush1.msra.mxu0 0.0
    %399 = vmatprep.subr.mxu0 0.0
    %400 = vmatpush1.msra.mxu0 0.0
    %401 = vmatprep.subr.mxu0 0.0
    %402 = vmatpush1.msra.mxu0 0.0
    %403 = vmatprep.subr.mxu0 0.0
    %404 = vmatpush1.msra.mxu0 0.0
    %405 = vmatprep.subr.mxu0 0.0
    %406 = vmatpush1.msra.mxu0 0.0
    %407 = vmatprep.subr.mxu0 0.0
    %408 = vmatpush1.msra.mxu0 0.0
    %409 = vmatprep.subr.mxu0 0.0
    %410 = vmatpush1.msra.mxu0 0.0
    %411 = vmatprep.subr.mxu0 0.0
    %412 = vmatpush1.msra.mxu0 0.0
    %413 = vmatprep.subr.mxu0 0.0
    %414 = vmatpush1.msra.mxu0 0.0
    %415 = vmatprep.subr.mxu0 0.0
    %416 = vmatpush1.msra.mxu0 0.0
    %417 = vmatprep.mubr.f32.mxu0 0.0
    %418 = vmatmul.mubr.f32.gmra.mrb[0].mxu0 %v342
    %v419 = vpop.f32.mrb[0].mxu0
    %v420 = vadd.f32 0.0, %v419
    %v421 = vpop.f32.mrb[0].mxu0
    %422 = vmatprep.mubr.f32.mxu0 0.0
    %423 = vmatmul.mubr.f32.gmra.mrb[0].mxu0 %v345
    %v424 = vpop.f32.mrb[0].mxu0
    %v425 = vadd.f32 0.0, %v424
    %v426 = vpop.f32.mrb[0].mxu0
    %427 = vmatprep.mubr.f32.mxu0 0.0
    %428 = vmatmul.mubr.f32.gmra.mrb[0].mxu0 %v348
    %v429 = vpop.f32.mrb[0].mxu0
    %v430 = vadd.f32 0.0, %v429
    %v431 = vpop.f32.mrb[0].mxu0
    %432 = vmatprep.mubr.f32.mxu0 0.0
    %433 = vmatmul.mubr.f32.gmra.mrb[0].mxu0 %v351
    %v434 = vpop.f32.mrb[0].mxu0
    %v435 = vadd.f32 0.0, %v434
    %v436 = vpop.f32.mrb[0].mxu0
    %437 = vdwg.mxu0
    %v438 = vadd.f32 %v329, %v420
    %v439 = vadd.f32 %v330, %v425
    %v440 = vadd.f32 %v331, %v430
    %v441 = vadd.f32 %v332, %v435
    %v442 = vld [vmem:[%s2] sm:$0x1]
    %v444 = vlaneseq
    %v445 = vshrl.u32 %v444, 7
    %v446 = vsub.s32 0, %v445
    %v447 = vrot.slane %v442, %v446
    %v449 = vadd.f32 %v438, %v447
    %v450 = vadd.f32 %v439, %v447
    %v451 = vadd.f32 %v440, %v447
    %v452 = vadd.f32 %v441, %v447
    %vm453 = vcmask 228352
    %454 = vst.msk [vmem:[#allocation2] sm:$0xff] %vm453, %v449
    %455 = vst.msk [vmem:[#allocation2 + $0x8] sm:$0xff] %vm453, %v450
    %456 = vst.msk [vmem:[#allocation2 + $0x40] sm:$0xff] %vm453, %v451
    %457 = vst.msk [vmem:[#allocation2 + $0x48] sm:$0xff] %vm453, %v452
    %462 = vrot.lane.b32.xlu0 %v449, 100
    %v463 = vpop.permute.xlu0 %462
    %464 = vrot.lane.b32.xlu0 %v450, 100
    %v465 = vpop.permute.xlu0 %464
    %466 = vrot.lane.b32.xlu0 %v451, 100
    %v467 = vpop.permute.xlu0 %466
    %468 = vrot.lane.b32.xlu0 %v452, 100
    %v469 = vpop.permute.xlu0 %468
    %s474 = scalar_lea.vmem [#allocation2], 16
    %475 = vst.msk [vmem:[%s474] sm:$0xff] %vm453, %v463
    %476 = vst.msk [vmem:[%s474 + $0x8] sm:$0xff] %vm453, %v465
    %477 = vst.msk [vmem:[%s474 + $0x40] sm:$0xff] %vm453, %v467
    %478 = vst.msk [vmem:[%s474 + $0x48] sm:$0xff] %vm453, %v469
    %479 = vrot.lane.b32.xlu0 %v449, 72
    %v480 = vpop.permute.xlu0 %479
    %481 = vrot.lane.b32.xlu0 %v450, 72
    %v482 = vpop.permute.xlu0 %481
    %483 = vrot.lane.b32.xlu0 %v451, 72
    %v484 = vpop.permute.xlu0 %483
    %485 = vrot.lane.b32.xlu0 %v452, 72
    %v486 = vpop.permute.xlu0 %485
    %s491 = scalar_lea.vmem [#allocation2], 32
    %492 = vst.msk [vmem:[%s491] sm:$0xff] %vm453, %v480
    %493 = vst.msk [vmem:[%s491 + $0x8] sm:$0xff] %vm453, %v482
    %494 = vst.msk [vmem:[%s491 + $0x40] sm:$0xff] %vm453, %v484
    %495 = vst.msk [vmem:[%s491 + $0x48] sm:$0xff] %vm453, %v486
    %496 = vrot.lane.b32.xlu0 %v449, 44
    %v497 = vpop.permute.xlu0 %496
    %498 = vrot.lane.b32.xlu0 %v450, 44
    %v499 = vpop.permute.xlu0 %498
    %500 = vrot.lane.b32.xlu0 %v451, 44
    %v501 = vpop.permute.xlu0 %500
    %502 = vrot.lane.b32.xlu0 %v452, 44
    %v503 = vpop.permute.xlu0 %502
    %s508 = scalar_lea.vmem [#allocation2], 48
    %509 = vst.msk [vmem:[%s508] sm:$0xff] %vm453, %v497
    %510 = vst.msk [vmem:[%s508 + $0x8] sm:$0xff] %vm453, %v499
    %511 = vst.msk [vmem:[%s508 + $0x40] sm:$0xff] %vm453, %v501
    %512 = vst.msk [vmem:[%s508 + $0x48] sm:$0xff] %vm453, %v503
    // Predicated region
    $region14: #{sp_conv_transpose2d.1} parent=1 // pred_check
      _
    $region15: #{sp_conv_transpose2d.1} parent=1 // pred_check_branch
      %514 = sbr.rel (0) target = $region17
    $region16: #{sp_conv_transpose2d.1} parent=1 // pred_region
      %s516 = ssub.s32 2048, 2048
      %517 = vsyncadd [#allocation3], %s516
      %s518 = sshll.u32 [#allocation2], 4
      %s519 = int_to_ptr.vmem [resolvable:$true] %s518
      %524 = dma.vmem_to_hbm [thread:$0]  %s519, 2048, %s3, [#allocation3], 128, 128, 8
    $region17: #{sp_conv_transpose2d.1} parent=1 // pred_fallthru
      _
    // Predicated region
    $region18: #{sp_conv_transpose2d.1} parent=1 // pred_check
      _
    $region19: #{sp_conv_transpose2d.1} parent=1 // pred_check_branch
      %526 = sbr.rel (0) target = $region21
    $region20: #{sp_conv_transpose2d.1} parent=1 // pred_region
      %527 = dma.done [#allocation3], 2048
    $region21: #{sp_conv_transpose2d.1} parent=1 // pred_fallthru
      _
    %528 = vsyncpa [#allocation3], 1

</llo_original>
